<compile_context>
chip_gen: v6e
topology: v6e:2x2x1
jax: 0.10.0
libtpu: 0.0.40
codegen_flags: <defaults>
</compile_context>

<pallas_src>
import jax
import jax.numpy as jnp
from jax.experimental import pallas as pl
from jax.experimental.pallas import tpu as pltpu


# ---------------------------------------------------------------------------
# Kernels (shared M,N,K-grid body; K is the innermost, "arbitrary" axis)
# ---------------------------------------------------------------------------
def _abc_linear_kernel(x_ref, wt_ref, o_ref, acc_ref):
    k = pl.program_id(2)

    @pl.when(k == 0)
    def _():
        acc_ref[...] = jnp.zeros_like(acc_ref)

    # bf16 cast of the activation tile happens in VMEM (VPU, not the
    # bottleneck); the matmul runs on the bf16 MXU path with f32 accumulation.
    acc_ref[...] += jnp.dot(x_ref[...].astype(wt_ref.dtype), wt_ref[...],
                            preferred_element_type=jnp.float32)

    @pl.when(k == pl.num_programs(2) - 1)
    def _():
        o_ref[...] = acc_ref[...].astype(o_ref.dtype)


def _abc_linear_bias_kernel(x_ref, wt_ref, b_ref, o_ref, acc_ref):
    k = pl.program_id(2)

    @pl.when(k == 0)
    def _():
        acc_ref[...] = jnp.zeros_like(acc_ref)

    acc_ref[...] += jnp.dot(x_ref[...].astype(wt_ref.dtype), wt_ref[...],
                            preferred_element_type=jnp.float32)

    @pl.when(k == pl.num_programs(2) - 1)
    def _():
        # bias add on the f32 accumulator, then cast to the output dtype
        o_ref[...] = (acc_ref[...] + b_ref[...]).astype(o_ref.dtype)


# ---------------------------------------------------------------------------
# One-time parameter preparation (do this at init, NOT per forward call)
# ---------------------------------------------------------------------------
def abc_linear_prepare(weight, bias=None, *, a=0.0, use_fan_in=True,
                       param_dtype=jnp.bfloat16):
    """weight: (out_features, in_features) f32, as in the PyTorch module.

    Folds the n_infty^(-a) scale (before the cast), transposes to (in, out),
    pads out_features to a multiple of 128 lanes, casts to `param_dtype`.
    """
    out_f, in_f = weight.shape
    n_infty = in_f if use_fan_in else out_f
    scale = float(n_infty) ** (-a)

    padded_out = pl.cdiv(out_f, 128) * 128
    wt = jnp.zeros((in_f, padded_out), param_dtype)
    wt = wt.at[:, :out_f].set(
        (weight.astype(jnp.float32) * scale).T.astype(param_dtype))

    b = None
    if bias is not None:
        b = jnp.zeros((1, padded_out), jnp.float32)
        b = b.at[0, :out_f].set(bias.astype(jnp.float32))

    return {"wt": wt, "bias": b, "out_features": out_f}


# ---------------------------------------------------------------------------
# Tile selection helper
# ---------------------------------------------------------------------------
def _pick_tile(total, target, quantum):
    """Largest multiple of `quantum` that is <= target and divides `total`;
    falls back to `total` (single block) if none exists or total <= target."""
    if total <= target:
        return total
    t = (target // quantum) * quantum
    while t >= quantum:
        if total % t == 0:
            return t
        t -= quantum
    return total


# ---------------------------------------------------------------------------
# Forward
# ---------------------------------------------------------------------------
def abc_linear_forward(x, params, *, out_dtype=jnp.float32,
                       tm_target=256, tn_target=512, tk_target=1024,
                       return_padded=False, interpret=False):
    """x: (B, in_features).  Returns (B, out_features) in `out_dtype`
    (or (B, padded_out) if return_padded=True, skipping the slice copy)."""
    wt, b, out_f = params["wt"], params["bias"], params["out_features"]
    B, d_in = x.shape
    assert d_in == wt.shape[0], "in_features mismatch"
    padded_out = wt.shape[1]

    # ---- tiles & grid -----------------------------------------------------
    # M: fixed 256-row tiles (full MXU rows on v6e/v7x); cdiv grid handles any
    #    B (partial last block masked by Pallas).  Small B => single block.
    tm = B if B <= tm_target else tm_target
    # N: stream weight in lane-dense slabs that divide padded_out (mult of 128)
    tn = _pick_tile(padded_out, tn_target, 128)
    # K: tile in_features only when it is large; tile must divide d_in so the
    #    matmul never reads unspecified padding of the runtime activation.
    tk = _pick_tile(d_in, tk_target, 128)

    grid_m = pl.cdiv(B, tm)
    grid_n = padded_out // tn
    grid_k = d_in // tk
    grid = (grid_m, grid_n, grid_k)

    # ---- BlockSpecs ---------------------------------------------------------
    x_spec = pl.BlockSpec((tm, tk), lambda i, j, k: (i, k))

    w_resident = (grid_n == 1 and grid_k == 1)   # weight block never changes
    if w_resident:
        # Single buffer: no pointless second copy of a constant block.
        w_spec = pl.BlockSpec((tk, tn), lambda i, j, k: (k, j),
                              pipeline_mode=pl.Buffered(1))
    else:
        w_spec = pl.BlockSpec((tk, tn), lambda i, j, k: (k, j))

    in_specs = [x_spec, w_spec]
    args = [x, wt]
    if b is not None:
        if grid_n == 1:
            b_spec = pl.BlockSpec((1, tn), lambda i, j, k: (0, j),
                                  pipeline_mode=pl.Buffered(1))
        else:
            b_spec = pl.BlockSpec((1, tn), lambda i, j, k: (0, j))
        in_specs.append(b_spec)
        args.append(b)
        kernel = _abc_linear_bias_kernel
    else:
        kernel = _abc_linear_kernel

    out_spec = pl.BlockSpec((tm, tn), lambda i, j, k: (i, j))

    # ---- explicit VMEM budget (v5e scoped default 16 MiB; v7x physical 64) --
    x_bytes = jnp.dtype(x.dtype).itemsize
    w_bytes = jnp.dtype(wt.dtype).itemsize
    o_bytes = jnp.dtype(out_dtype).itemsize
    w_bufs = 1 if w_resident else 2
    est_vmem = (2 * tm * tk * x_bytes          # x, double-buffered
                + w_bufs * tk * tn * w_bytes   # weight slabs
                + 2 * tm * tn * o_bytes        # output, double-buffered
                + tm * tn * 4)                 # f32 accumulator scratch
    if b is not None:
        est_vmem += 2 * tn * 4
    vmem_limit = int(min(max(2 * est_vmem, 32 << 20), 64 << 20))

    cost = pl.CostEstimate(
        flops=2 * B * d_in * padded_out,
        transcendentals=0,
        bytes_accessed=(B * d_in * x_bytes
                        + d_in * padded_out * w_bytes
                        + B * padded_out * o_bytes
                        + (padded_out * 4 if b is not None else 0)),
    )

    out_padded = pl.pallas_call(
        kernel,
        out_shape=jax.ShapeDtypeStruct((B, padded_out), out_dtype),
        grid_spec=pltpu.PrefetchScalarGridSpec(
            num_scalar_prefetch=0,
            grid=grid,
            in_specs=in_specs,
            out_specs=out_spec,
            scratch_shapes=[pltpu.VMEM((tm, tn), jnp.float32)],
        ),
        compiler_params=pltpu.CompilerParams(
            # M/N shard across the two v7x TensorCores; K is the reduction.
            dimension_semantics=("parallel", "parallel", "arbitrary"),
            vmem_limit_bytes=vmem_limit,
        ),
        cost_estimate=cost,
        interpret=interpret,
    )(*args)

    if return_padded or padded_out == out_f:
        return out_padded
    # NOTE: this slice is an extra output-sized HBM round trip; pass
    # return_padded=True and slice in the consumer to avoid it at large B.
    return out_padded[:, :out_f]


# ---------------------------------------------------------------------------
# Demo / correctness check
# ---------------------------------------------------------------------------
if __name__ == "__main__":
    key = jax.random.PRNGKey(0)
    k_x, k_w, k_w2, k_b, k_x3, k_w3 = jax.random.split(key, 6)

    # ---- test 1: module defaults (bias=False), small shapes -----------------
    B, in_f, out_f = 8, 256, 64
    a_exp, b_exp = 0.5, 0.5
    n_infty = in_f                              # use_fan_in=True
    scale = n_infty ** (-a_exp)

    x = jax.random.normal(k_x, (B, in_f), jnp.float32)
    # reset_parameters(): weight ~ N(0, n_infty^(-b))
    w = jax.random.normal(k_w, (out_f, in_f), jnp.float32) * (n_infty ** (-b_exp))

    params = abc_linear_prepare(w, None, a=a_exp, use_fan_in=True)
    y = jax.block_until_ready(abc_linear_forward(x, params))
    assert y.shape == (B, out_f) and y.dtype == jnp.float32

    # matched reference (same bf16-in / f32-accumulate path as the kernel)
    ref_bf16 = jnp.dot(x.astype(jnp.bfloat16),
                       (w * scale).T.astype(jnp.bfloat16),
                       preferred_element_type=jnp.float32)
    assert jnp.allclose(y, ref_bf16, atol=1e-3, rtol=1e-3)
    # exact f32 reference (loose tol: only bf16 quantization error allowed)
    ref_f32 = x @ (w * scale).T
    assert jnp.allclose(y, ref_f32, atol=5e-3, rtol=5e-2)

    # ---- test 2: bias=True ---------------------------------------------------
    w2 = jax.random.normal(k_w2, (out_f, in_f), jnp.float32) * (n_infty ** (-b_exp))
    bias = jax.random.normal(k_b, (out_f,), jnp.float32) * 0.1   # non-zero to exercise the add
    params_b = abc_linear_prepare(w2, bias, a=a_exp, use_fan_in=True)
    y2 = jax.block_until_ready(abc_linear_forward(x, params_b))
    ref2 = jnp.dot(x.astype(jnp.bfloat16),
                   (w2 * scale).T.astype(jnp.bfloat16),
                   preferred_element_type=jnp.float32) + bias[None, :]
    assert y2.shape == (B, out_f)
    assert jnp.allclose(y2, ref2, atol=1e-3, rtol=1e-3)

    # ---- test 3: unaligned batch (cdiv grid, masked partial M block) --------
    B3, out_f3 = 300, 128
    x3 = jax.random.normal(k_x3, (B3, in_f), jnp.float32)
    w3 = jax.random.normal(k_w3, (out_f3, in_f), jnp.float32) * (n_infty ** (-b_exp))
    params3 = abc_linear_prepare(w3, None, a=a_exp, use_fan_in=True)
    y3 = jax.block_until_ready(abc_linear_forward(x3, params3))
    ref3 = jnp.dot(x3.astype(jnp.bfloat16),
                   (w3 * scale).T.astype(jnp.bfloat16),
                   preferred_element_type=jnp.float32)
    assert y3.shape == (B3, out_f3)
    assert jnp.allclose(y3, ref3, atol=1e-3, rtol=1e-3)

    print("KERNEL_OK")
</pallas_src>

<mosaic_0001>
module attributes {stable_mosaic.version = 11 : i64} {
  func.func @_abc_linear_kernel(%arg0: i32, %arg1: i32, %arg2: i32, %arg3: memref<8x256xf32, #tpu.memory_space<vmem>>, %arg4: memref<256x128xbf16, #tpu.memory_space<vmem>>, %arg5: memref<8x128xf32, #tpu.memory_space<vmem>>, %arg6: memref<8x128xf32, #tpu.memory_space<vmem>>) attributes {dimension_semantics = [#tpu.dimension_semantics<parallel>, #tpu.dimension_semantics<parallel>, #tpu.dimension_semantics<arbitrary>], iteration_bounds = array<i64: 1, 1, 1>, scalar_prefetch = 0 : i64, scratch_operands = 1 : i64, tpu.core_type = #tpu.core_type<tc>, window_params = [{transform_indices = @transform_0, window_bounds = array<i64: 8, 256>}, {pipeline_mode = #tpu.pipeline_mode<synchronous>, transform_indices = @transform_1, window_bounds = array<i64: 256, 128>}, {transform_indices = @transform_2, window_bounds = array<i64: 8, 128>}]} {
    %c0_i32 = arith.constant 0 : i32
    %0 = arith.cmpi eq, %arg2, %c0_i32 : i32
    %1 = arith.extui %0 : i1 to i32
    %c0_i32_0 = arith.constant 0 : i32
    %2 = arith.cmpi ne, %1, %c0_i32_0 : i32
    scf.if %2 {
      %cst_10 = arith.constant 0.000000e+00 : f32
      %13 = vector.broadcast %cst_10 : f32 to vector<8x128xf32>
      %c0_11 = arith.constant 0 : index
      %c0_12 = arith.constant 0 : index
      %14 = vector.load %arg6[%c0_11, %c0_12] : memref<8x128xf32, #tpu.memory_space<vmem>>, vector<8x128xf32>
      tpu.vector_store %arg6[%c0_11, %c0_12], %13 {strides = array<i32>} : memref<8x128xf32, #tpu.memory_space<vmem>>, vector<8x128xf32>,
    } else {
    }
    %c0 = arith.constant 0 : index
    %c0_1 = arith.constant 0 : index
    %3 = vector.load %arg6[%c0, %c0_1] : memref<8x128xf32, #tpu.memory_space<vmem>>, vector<8x128xf32>
    %c0_2 = arith.constant 0 : index
    %c0_3 = arith.constant 0 : index
    %4 = vector.load %arg3[%c0_2, %c0_3] : memref<8x256xf32, #tpu.memory_space<vmem>>, vector<8x256xf32>
    %5 = arith.truncf %4 : vector<8x256xf32> to vector<8x256xbf16>
    %c0_4 = arith.constant 0 : index
    %c0_5 = arith.constant 0 : index
    %6 = vector.load %arg4[%c0_4, %c0_5] : memref<256x128xbf16, #tpu.memory_space<vmem>>, vector<256x128xbf16>
    %cst = arith.constant dense<0.000000e+00> : vector<8x128xf32>
    %7 = tpu.matmul %5, %6, %cst {dimension_numbers = #tpu.dot_dimension_numbers<[1], [0], [0], [1], [0, 0, 1, 1], [], []>} : vector<8x256xbf16>, vector<256x128xbf16>, vector<8x128xf32> -> vector<8x128xf32>
    %8 = arith.addf %3, %7 : vector<8x128xf32>
    %c0_6 = arith.constant 0 : index
    %c0_7 = arith.constant 0 : index
    %9 = vector.load %arg6[%c0_6, %c0_7] : memref<8x128xf32, #tpu.memory_space<vmem>>, vector<8x128xf32>
    tpu.vector_store %arg6[%c0_6, %c0_7], %8 {strides = array<i32>} : memref<8x128xf32, #tpu.memory_space<vmem>>, vector<8x128xf32>,
    %c0_i32_8 = arith.constant 0 : i32
    %10 = arith.cmpi eq, %arg2, %c0_i32_8 : i32
    %11 = arith.extui %10 : i1 to i32
    %c0_i32_9 = arith.constant 0 : i32
    %12 = arith.cmpi ne, %11, %c0_i32_9 : i32
    scf.if %12 {
      %c0_10 = arith.constant 0 : index
      %c0_11 = arith.constant 0 : index
      %13 = vector.load %arg6[%c0_10, %c0_11] : memref<8x128xf32, #tpu.memory_space<vmem>>, vector<8x128xf32>
      %c0_12 = arith.constant 0 : index
      %c0_13 = arith.constant 0 : index
      %14 = vector.load %arg5[%c0_12, %c0_13] : memref<8x128xf32, #tpu.memory_space<vmem>>, vector<8x128xf32>
      tpu.vector_store %arg5[%c0_12, %c0_13], %13 {strides = array<i32>} : memref<8x128xf32, #tpu.memory_space<vmem>>, vector<8x128xf32>,
    } else {
    }
    return
  }
  func.func @transform_0(%arg0: i32, %arg1: i32, %arg2: i32) -> (i32, i32) {
    %c0_i32 = arith.constant 0 : i32
    return %arg0, %arg2 : i32, i32
  }
  func.func @transform_1(%arg0: i32, %arg1: i32, %arg2: i32) -> (i32, i32) {
    %c0_i32 = arith.constant 0 : i32
    return %arg2, %arg1 : i32, i32
  }
  func.func @transform_2(%arg0: i32, %arg1: i32, %arg2: i32) -> (i32, i32) {
    %c0_i32 = arith.constant 0 : i32
    return %arg0, %arg1 : i32, i32
  }
}

</mosaic_0001>

<llo_original>
// kernel: tpu_custom_call.1
$region0: #{tpu_custom_call.1}
  #allocation0 [shape = 'u32[]', space=smem, size = 0x4, offset = 0x4, fixed_abs, tag = 'smem constant byte address 0x4 - core index']
  #allocation1 [shape = 'u32[144,128]{1,0:T(1,128)}', space=vmem, size = 0x12000, scoped, tag = 'internal scratch']
  #allocation2 [shape = 'f32[8,128]{1,0:T(8,128)}', space=vmem, size = 0x1000, scoped, tag = 'scratch operand']
  %s0 = inlined_call_operand.hbm [shape: f32[8,256], index: 0, kind: input, shape index: {}]
  %s1 = inlined_call_operand.hbm [shape: bf16[256,128], index: 1, kind: input, shape index: {}]
  %s2 = inlined_call_operand.hbm [shape: f32[8,128], index: 2, kind: output, shape index: {}]
  %s3 = sld [smem:[#allocation0]]
  $region34: #{tpu_custom_call.1} parent=0
    _
  %s5 = ssub.s32 1, %s3
  %s6 = scalar_select 0, %s5, %s3
  $region1: #{tpu_custom_call.1} parent=0
    #allocation3 [shape = 'u8[8192]{0}', space=vmem, size = 0x2000, scoped, tag = 'input window, operand 0, single buffered']
    #allocation4 [shape = 's32[1]{0}', space=sflag, size = 0x4, scoped, tag = 'scoped memory for tpu_custom_call.1']
    #allocation5 [shape = 's32[1]{0}', space=sflag, size = 0x4, scoped, tag = 'scoped memory for tpu_custom_call.1']
    #allocation6 [shape = 'u8[65536]{0}', space=vmem, size = 0x10000, scoped, tag = 'input window, operand 1, single buffered']
    #allocation7 [shape = 's32[1]{0}', space=sflag, size = 0x4, scoped, tag = 'scoped memory for tpu_custom_call.1']
    #allocation8 [shape = 'u8[4096]{0}', space=vmem, size = 0x1000, scoped, tag = 'output window, operand 0, single buffered']
    %7 = vsyncpa [#allocation4], 0
    %8 = vsyncpa [#allocation7], 0
    %9 = vsyncpa [#allocation5], 0
    // Predicated region
    $region2: #{tpu_custom_call.1} parent=1 // pred_check
      _
    $region3: #{tpu_custom_call.1} parent=1 // pred_check_branch
      %11 = sbr.rel (0) target = $region5
    $region4: #{tpu_custom_call.1} parent=1 // pred_region
      %s13 = ssub.s32 256, 256
      %14 = vsyncadd [#allocation4], %s13
      %s16 = sshll.u32 [#allocation3], 4
      %s17 = int_to_ptr.vmem [resolvable:$true] %s16
      %19 = dma.hbm_to_vmem [thread:$0]  %s0, 256, %s17, [#allocation4]
    $region5: #{tpu_custom_call.1} parent=1 // pred_fallthru
      _
    // Predicated region
    $region6: #{tpu_custom_call.1} parent=1 // pred_check
      _
    $region7: #{tpu_custom_call.1} parent=1 // pred_check_branch
      %21 = sbr.rel (0) target = $region9
    $region8: #{tpu_custom_call.1} parent=1 // pred_region
      %s23 = ssub.s32 2048, 2048
      %24 = vsyncadd [#allocation7], %s23
      %s25 = sshll.u32 [#allocation6], 4
      %s26 = int_to_ptr.vmem [resolvable:$true] %s25
      %31 = dma.hbm_to_vmem [thread:$0]  %s1, 2048, %s26, [#allocation7], 64, 64, 4
    $region9: #{tpu_custom_call.1} parent=1 // pred_fallthru
      _
    // Predicated region
    $region10: #{tpu_custom_call.1} parent=1 // pred_check
      _
    $region11: #{tpu_custom_call.1} parent=1 // pred_check_branch
      %33 = sbr.rel (0) target = $region13
    $region12: #{tpu_custom_call.1} parent=1 // pred_region
      %34 = dma.done [#allocation4], 256
    $region13: #{tpu_custom_call.1} parent=1 // pred_fallthru
      _
    // Predicated region
    $region14: #{tpu_custom_call.1} parent=1 // pred_check
      _
    $region15: #{tpu_custom_call.1} parent=1 // pred_check_branch
      %36 = sbr.rel (0) target = $region17
    $region16: #{tpu_custom_call.1} parent=1 // pred_region
      %37 = dma.done [#allocation7], 2048
    $region17: #{tpu_custom_call.1} parent=1 // pred_fallthru
      _
    %p39 = scmp.eq.s32.totalorder 0, 0
    // Predicated region
    $region18: #{tpu_custom_call.1} parent=1 // pred_check
      %p40 = pneg %p39
    $region19: #{tpu_custom_call.1} parent=1 // pred_check_branch
      %42 = sbr.rel (%p40) target = $region21
    $region20: #{tpu_custom_call.1} parent=1 // pred_region
      %43 = vst [vmem:[#allocation2] sm:$0xff] 0.0
    $region21: #{tpu_custom_call.1} parent=1 // pred_fallthru
      _
    %v44 = vld [vmem:[#allocation2] sm:$0xff]
    %v45 = vld [vmem:[#allocation3] sm:$0xff]
    %v46 = vld [vmem:[#allocation3 + $0x8] sm:$0xff]
    %v47 = vpack.c.bf16 %v45, %v45
    %v48 = vpack.c.bf16 %v46, %v46
    %v49 = vld [vmem:[#allocation6] sm:$0xf]
    %v50 = vld [vmem:[#allocation6 + $0x4] sm:$0xf]
    %v51 = vld [vmem:[#allocation6 + $0x8] sm:$0xf]
    %v52 = vld [vmem:[#allocation6 + $0xc] sm:$0xf]
    %v53 = vld [vmem:[#allocation6 + $0x10] sm:$0xf]
    %v54 = vld [vmem:[#allocation6 + $0x14] sm:$0xf]
    %v55 = vld [vmem:[#allocation6 + $0x18] sm:$0xf]
    %v56 = vld [vmem:[#allocation6 + $0x1c] sm:$0xf]
    %v57 = vld [vmem:[#allocation6 + $0x20] sm:$0xf]
    %v58 = vld [vmem:[#allocation6 + $0x24] sm:$0xf]
    %v59 = vld [vmem:[#allocation6 + $0x28] sm:$0xf]
    %v60 = vld [vmem:[#allocation6 + $0x2c] sm:$0xf]
    %v61 = vld [vmem:[#allocation6 + $0x30] sm:$0xf]
    %v62 = vld [vmem:[#allocation6 + $0x34] sm:$0xf]
    %v63 = vld [vmem:[#allocation6 + $0x38] sm:$0xf]
    %v64 = vld [vmem:[#allocation6 + $0x3c] sm:$0xf]
    %v65 = vld [vmem:[#allocation6 + $0x40] sm:$0xf]
    %v66 = vld [vmem:[#allocation6 + $0x44] sm:$0xf]
    %v67 = vld [vmem:[#allocation6 + $0x48] sm:$0xf]
    %v68 = vld [vmem:[#allocation6 + $0x4c] sm:$0xf]
    %v69 = vld [vmem:[#allocation6 + $0x50] sm:$0xf]
    %v70 = vld [vmem:[#allocation6 + $0x54] sm:$0xf]
    %v71 = vld [vmem:[#allocation6 + $0x58] sm:$0xf]
    %v72 = vld [vmem:[#allocation6 + $0x5c] sm:$0xf]
    %v73 = vld [vmem:[#allocation6 + $0x60] sm:$0xf]
    %v74 = vld [vmem:[#allocation6 + $0x64] sm:$0xf]
    %v75 = vld [vmem:[#allocation6 + $0x68] sm:$0xf]
    %v76 = vld [vmem:[#allocation6 + $0x6c] sm:$0xf]
    %v77 = vld [vmem:[#allocation6 + $0x70] sm:$0xf]
    %v78 = vld [vmem:[#allocation6 + $0x74] sm:$0xf]
    %v79 = vld [vmem:[#allocation6 + $0x78] sm:$0xf]
    %v80 = vld [vmem:[#allocation6 + $0x7c] sm:$0xf]
    %v113 = vunpack.c.l.b16 %v49
    %v114 = vunpack.c.l.b16 %v50
    %v115 = vunpack.c.l.b16 %v51
    %v116 = vunpack.c.l.b16 %v52
    %v117 = vunpack.c.l.b16 %v53
    %v118 = vunpack.c.l.b16 %v54
    %v119 = vunpack.c.l.b16 %v55
    %v120 = vunpack.c.l.b16 %v56
    %v121 = vunpack.c.l.b16 %v57
    %v122 = vunpack.c.l.b16 %v58
    %v123 = vunpack.c.l.b16 %v59
    %v124 = vunpack.c.l.b16 %v60
    %v125 = vunpack.c.l.b16 %v61
    %v126 = vunpack.c.l.b16 %v62
    %v127 = vunpack.c.l.b16 %v63
    %v128 = vunpack.c.l.b16 %v64
    %v129 = vunpack.c.l.b16 %v65
    %v130 = vunpack.c.l.b16 %v66
    %v131 = vunpack.c.l.b16 %v67
    %v132 = vunpack.c.l.b16 %v68
    %v133 = vunpack.c.l.b16 %v69
    %v134 = vunpack.c.l.b16 %v70
    %v135 = vunpack.c.l.b16 %v71
    %v136 = vunpack.c.l.b16 %v72
    %v137 = vunpack.c.l.b16 %v73
    %v138 = vunpack.c.l.b16 %v74
    %v139 = vunpack.c.l.b16 %v75
    %v140 = vunpack.c.l.b16 %v76
    %v141 = vunpack.c.l.b16 %v77
    %v142 = vunpack.c.l.b16 %v78
    %v143 = vunpack.c.l.b16 %v79
    %v144 = vunpack.c.l.b16 %v80
    %v145 = vpack.c.b16 %v114, %v113
    %v146 = vpack.c.b16 %v116, %v115
    %v147 = vpack.c.b16 %v118, %v117
    %v148 = vpack.c.b16 %v120, %v119
    %v149 = vpack.c.b16 %v122, %v121
    %v150 = vpack.c.b16 %v124, %v123
    %v151 = vpack.c.b16 %v126, %v125
    %v152 = vpack.c.b16 %v128, %v127
    %v153 = vpack.c.b16 %v130, %v129
    %v154 = vpack.c.b16 %v132, %v131
    %v155 = vpack.c.b16 %v134, %v133
    %v156 = vpack.c.b16 %v136, %v135
    %v157 = vpack.c.b16 %v138, %v137
    %v158 = vpack.c.b16 %v140, %v139
    %v159 = vpack.c.b16 %v142, %v141
    %v160 = vpack.c.b16 %v144, %v143
    %177 = vmatprep.subr.bf16.mxu0 0
    %178 = vmatpush1.bf16.msra.mxu0 %v152
    %179 = vmatprep.subr.bf16.mxu0 0
    %180 = vmatpush1.bf16.msra.mxu0 %v151
    %181 = vmatprep.subr.bf16.mxu0 0
    %182 = vmatpush1.bf16.msra.mxu0 %v150
    %183 = vmatprep.subr.bf16.mxu0 0
    %184 = vmatpush1.bf16.msra.mxu0 %v149
    %185 = vmatprep.subr.bf16.mxu0 0
    %186 = vmatpush1.bf16.msra.mxu0 %v148
    %187 = vmatprep.subr.bf16.mxu0 0
    %188 = vmatpush1.bf16.msra.mxu0 %v147
    %189 = vmatprep.subr.bf16.mxu0 0
    %190 = vmatpush1.bf16.msra.mxu0 %v146
    %191 = vmatprep.subr.bf16.mxu0 0
    %192 = vmatpush1.bf16.msra.mxu0 %v145
    %193 = vmatprep.subr.bf16.mxu0 0
    %194 = vmatpush2.bf16.msra.mxu0 %v160
    %195 = vmatprep.subr.bf16.mxu0 0
    %196 = vmatpush2.bf16.msra.mxu0 %v159
    %197 = vmatprep.subr.bf16.mxu0 0
    %198 = vmatpush2.bf16.msra.mxu0 %v158
    %199 = vmatprep.subr.bf16.mxu0 0
    %200 = vmatpush2.bf16.msra.mxu0 %v157
    %201 = vmatprep.subr.bf16.mxu0 0
    %202 = vmatpush2.bf16.msra.mxu0 %v156
    %203 = vmatprep.subr.bf16.mxu0 0
    %204 = vmatpush2.bf16.msra.mxu0 %v155
    %205 = vmatprep.subr.bf16.mxu0 0
    %206 = vmatpush2.bf16.msra.mxu0 %v154
    %207 = vmatprep.subr.bf16.mxu0 0
    %208 = vmatpush2.bf16.msra.mxu0 %v153
    %209 = vmatprep.mubr.bf16.mxu0 %v48
    %210 = vmatmul.mubr.bf16.gmra.mxu0 %v47
    %v211 = vpop.f32.mrf.mxu0
    %v212 = vadd.f32 0.0, %v211
    %v213 = vpop.f32.mrf.mxu0
    %v214 = vpop.f32.mrf.mxu0
    %v215 = vpop.f32.mrf.mxu0
    %216 = vdwg.mxu0
    %v217 = vadd.f32 %v44, %v212
    %218 = vst [vmem:[#allocation2] sm:$0xff] %v217
    // Predicated region
    $region22: #{tpu_custom_call.1} parent=1 // pred_check
      %p219 = pneg %p39
    $region23: #{tpu_custom_call.1} parent=1 // pred_check_branch
      %221 = sbr.rel (%p219) target = $region25
    $region24: #{tpu_custom_call.1} parent=1 // pred_region
      %v222 = vld [vmem:[#allocation2] sm:$0xff]
      %223 = vst [vmem:[#allocation8] sm:$0xff] %v222
    $region25: #{tpu_custom_call.1} parent=1 // pred_fallthru
      _
    // Predicated region
    $region26: #{tpu_custom_call.1} parent=1 // pred_check
      _
    $region27: #{tpu_custom_call.1} parent=1 // pred_check_branch
      %225 = sbr.rel (0) target = $region29
    $region28: #{tpu_custom_call.1} parent=1 // pred_region
      %s227 = ssub.s32 128, 128
      %228 = vsyncadd [#allocation5], %s227
      %s230 = sshll.u32 [#allocation8], 4
      %s231 = int_to_ptr.vmem [resolvable:$true] %s230
      %233 = dma.vmem_to_hbm [thread:$0]  %s231, 128, %s2, [#allocation5]
    $region29: #{tpu_custom_call.1} parent=1 // pred_fallthru
      _
    // Predicated region
    $region30: #{tpu_custom_call.1} parent=1 // pred_check
      _
    $region31: #{tpu_custom_call.1} parent=1 // pred_check_branch
      %235 = sbr.rel (0) target = $region33
    $region32: #{tpu_custom_call.1} parent=1 // pred_region
      %236 = dma.done [#allocation5], 128
    $region33: #{tpu_custom_call.1} parent=1 // pred_fallthru
      _
    %237 = vsyncpa [#allocation4], 1
    %238 = vsyncpa [#allocation7], 1
    %239 = vsyncpa [#allocation5], 1

</llo_original>
